<compile_context>
chip_gen: v7x
topology: tpu7x:2x2x1
jax: 0.10.0
libtpu: 0.0.40
codegen_flags: <defaults>
</compile_context>

<pallas_src>
import functools
import math

import jax
import jax.numpy as jnp
from jax.experimental import pallas as pl
from jax.experimental.pallas import tpu as pltpu


def _round_up(x, m):
    return ((x + m - 1) // m) * m


def _vmem_capacity_bytes():
    """Query per-core VMEM capacity; fall back to the v7x (smallest) value."""
    try:
        info = pltpu.get_tpu_info()
        cap = getattr(info, "vmem_capacity_bytes", None)
        if cap is None:
            cap = getattr(info, "vmem_size_bytes", None)
        if cap:
            return int(cap)
    except Exception:
        pass
    return 64 * 1024 * 1024


def _residual_dense_kernel(x_ref, w_ref, b_ref, *rest, res_con, activation,
                           use_acc):
    # refs: x (tm, tk), w (tk, tn), b (1, tn), [residual (tm, tn)],
    #       out (tm, tn), [acc scratch (tm, tn) f32 -- only when out is low
    #       precision; otherwise we accumulate straight into the output block].
    if res_con and use_acc:
        r_ref, o_ref, acc_ref = rest
    elif res_con:
        r_ref, o_ref = rest
        acc_ref = o_ref
    elif use_acc:
        o_ref, acc_ref = rest
    else:
        (o_ref,) = rest
        acc_ref = o_ref

    k = pl.program_id(2)

    @pl.when(k == 0)
    def _():
        acc_ref[...] = jnp.zeros_like(acc_ref)

    acc_ref[...] += jnp.dot(
        x_ref[...], w_ref[...], preferred_element_type=jnp.float32
    )

    @pl.when(k == pl.num_programs(2) - 1)
    def _():
        y = acc_ref[...].astype(jnp.float32) + b_ref[...].astype(jnp.float32)
        y = activation(y)
        if res_con:  # static: input_size == output_size
            y = y + r_ref[...].astype(jnp.float32)
        o_ref[...] = y.astype(o_ref.dtype)


def _fit_tiles(tm, tn, tk, *, mm_bytes, out_bytes, res_bytes, res_con,
               use_acc, budget, sub):
    """Shrink (tk, then tn, then tm) until the estimated double-buffered
    VMEM footprint fits the budget."""

    def footprint(tm_, tn_, tk_):
        f = 2 * tm_ * tk_ * mm_bytes          # x tile (double buffered)
        f += 2 * tk_ * tn_ * mm_bytes         # w tile
        f += 2 * tn_ * 4                      # bias tile (f32)
        f += 2 * tm_ * tn_ * out_bytes        # output tile
        if res_con:
            f += 2 * tm_ * tn_ * res_bytes    # residual tile
        if use_acc:
            f += tm_ * tn_ * 4                # f32 accumulator scratch
        return f

    while footprint(tm, tn, tk) > budget and tk > 128:
        tk = max(128, _round_up(tk // 2, 128))
    while footprint(tm, tn, tk) > budget and tn > 128:
        tn = max(128, _round_up(tn // 2, 128))
    while footprint(tm, tn, tk) > budget and tm > sub:
        tm = max(sub, _round_up(tm // 2, sub))
    return tm, tn, tk


def _pad_cast_2d(a, rows, cols, dtype=None):
    """Cast + pad a 2-D array, skipping whatever is a no-op."""
    if dtype is not None and a.dtype != dtype:
        a = a.astype(dtype)
    pr, pc = rows - a.shape[0], cols - a.shape[1]
    if pr or pc:
        a = jnp.pad(a, ((0, pr), (0, pc)))
    return a


def residual_dense(x, w, b, *, activation=None, tm=512, tn=1024, tk=2048,
                   compute_dtype=None):
    """ResidualDense forward: activation(x @ w + b) (+ x if square layer).

    x: (..., input_size); w: (input_size, output_size) (transpose of the
    PyTorch nn.Linear weight); b: (output_size,).

    compute_dtype: MXU operand dtype.  Defaults to bfloat16 for float32
    inputs (accumulation is always f32); pass jnp.float32 for full precision.
    """
    if activation is None:
        activation = lambda v: v  # torch.nn.Identity()

    in_size, out_size = w.shape
    orig_shape = x.shape
    x2 = x.reshape(-1, in_size)
    n_rows = x2.shape[0]
    res_con = in_size == out_size
    out_dtype = x.dtype

    # bf16 MXU operands by default for f32 inputs (biggest throughput lever).
    if compute_dtype is None:
        mm_dtype = jnp.bfloat16 if x2.dtype == jnp.float32 else x2.dtype
    else:
        mm_dtype = compute_dtype
    mm_bytes = jnp.dtype(mm_dtype).itemsize
    out_bytes = jnp.dtype(out_dtype).itemsize
    res_bytes = jnp.dtype(x2.dtype).itemsize
    sub = max(8, 32 // mm_bytes)  # min sublane tile: 8 (f32), 16 (bf16), 32 (8-bit)

    # Accumulate directly into the output block when it is f32 (saves the
    # scratch + a full-tile copy); keep a f32 scratch for low-precision outs.
    use_acc = out_dtype != jnp.float32

    # Clamp tile sizes for small problems, respecting dtype-minimum tiles.
    tm = min(tm, _round_up(n_rows, sub))
    tn = min(tn, _round_up(out_size, 128))
    tk = min(tk, _round_up(in_size, 128))

    # Fit tiles to the per-core VMEM budget (v7x: 64 MiB; v5e/v6e: 128 MiB).
    vmem_cap = _vmem_capacity_bytes()
    tm, tn, tk = _fit_tiles(
        tm, tn, tk, mm_bytes=mm_bytes, out_bytes=out_bytes,
        res_bytes=res_bytes, res_con=res_con, use_acc=use_acc,
        budget=int(0.5 * vmem_cap), sub=sub)

    # Small-problem megacore help: make sure a "parallel" axis has >=2 blocks
    # when the row count allows it (v7x has 2 TensorCores per chip).
    if (_round_up(n_rows, tm) // tm) * (_round_up(out_size, tn) // tn) < 2:
        tm_half = _round_up((n_rows + 1) // 2, sub)
        if tm_half < tm:
            tm = tm_half

    m_p = _round_up(n_rows, tm)
    n_p = _round_up(out_size, tn)
    k_p = _round_up(in_size, tk)

    # Operands: cast/pad only when needed (no gratuitous HBM round trips).
    x_mm = _pad_cast_2d(x2, m_p, k_p, mm_dtype)
    w_p = _pad_cast_2d(w, k_p, n_p, mm_dtype)
    b_p = _pad_cast_2d(b.reshape(1, out_size), 1, n_p)

    args = [x_mm, w_p, b_p]
    in_specs = [
        pl.BlockSpec((tm, tk), lambda i, j, k: (i, k)),   # x tile
        pl.BlockSpec((tk, tn), lambda i, j, k: (k, j)),   # weight tile
        pl.BlockSpec((1, tn), lambda i, j, k: (0, j)),    # bias tile
    ]
    if res_con:
        # Residual in original precision; index map is constant over k so the
        # pipeline fetches this block once per (i, j).  Reuse x2 directly when
        # no padding is required.
        if m_p == n_rows and n_p == out_size:
            x_res = x2
        else:
            x_res = _pad_cast_2d(x2, m_p, n_p)
        args.append(x_res)
        in_specs.append(pl.BlockSpec((tm, tn), lambda i, j, k: (i, j)))

    scratch_shapes = [pltpu.VMEM((tm, tn), jnp.float32)] if use_acc else []

    kernel = functools.partial(
        _residual_dense_kernel, res_con=res_con, activation=activation,
        use_acc=use_acc)

    vmem_limit = min(int(0.70 * vmem_cap), 100 * 1024 * 1024)

    out_padded = pl.pallas_call(
        kernel,
        out_shape=jax.ShapeDtypeStruct((m_p, n_p), out_dtype),
        grid_spec=pltpu.PrefetchScalarGridSpec(
            num_scalar_prefetch=0,
            grid=(m_p // tm, n_p // tn, k_p // tk),
            in_specs=in_specs,
            out_specs=pl.BlockSpec((tm, tn), lambda i, j, k: (i, j)),
            scratch_shapes=scratch_shapes,
        ),
        compiler_params=pltpu.CompilerParams(
            dimension_semantics=("parallel", "parallel", "arbitrary"),
            vmem_limit_bytes=vmem_limit,
        ),
    )(*args)

    out2 = out_padded
    if m_p != n_rows or n_p != out_size:
        out2 = out_padded[:n_rows, :out_size]
    return out2.reshape(orig_shape[:-1] + (out_size,))


def init_linear_params(key, input_size, output_size, dtype=jnp.float32):
    """Deterministic init matching torch.nn.Linear's default (uniform +/- 1/sqrt(fan_in))."""
    kw, kb = jax.random.split(key)
    bound = 1.0 / math.sqrt(input_size)
    # Stored as (input_size, output_size) == transpose of torch's (out, in) weight.
    w = jax.random.uniform(kw, (input_size, output_size), dtype, -bound, bound)
    b = jax.random.uniform(kb, (output_size,), dtype, -bound, bound)
    return w, b


if __name__ == "__main__":
    key = jax.random.PRNGKey(0)
    k_x, k_p1, k_p2, k_x3, k_p3 = jax.random.split(key, 5)

    batch, seq, hidden = 2, 8, 32
    x = jax.random.normal(k_x, (batch, seq, hidden), jnp.float32)
    w1, b1 = init_linear_params(k_p1, hidden, hidden)

    # Case 1: square layer -> residual active, Identity activation.
    # Full-precision MXU path (compute_dtype=f32): tight tolerance.
    out1 = residual_dense(x, w1, b1, activation=None, compute_dtype=jnp.float32)
    out1 = jax.block_until_ready(out1)
    ref1 = x @ w1 + b1 + x
    assert out1.shape == ref1.shape
    assert jnp.allclose(out1, ref1, atol=1e-5, rtol=1e-5)

    # Case 2: same layer, default bf16 MXU operands (f32 accumulation):
    # looser tolerance reflecting the bf16 operand rounding.
    out1b = residual_dense(x, w1, b1, activation=None)
    out1b = jax.block_until_ready(out1b)
    assert jnp.allclose(out1b, ref1, atol=2e-2, rtol=2e-2)

    # Case 3: non-square layer (32 -> 64) -> no residual, tanh activation,
    # default bf16 compute.
    out_features = 64
    w2, b2 = init_linear_params(k_p2, hidden, out_features)
    out2 = residual_dense(x, w2, b2, activation=jnp.tanh)
    out2 = jax.block_until_ready(out2)
    ref2 = jnp.tanh(x @ w2 + b2)
    assert out2.shape == ref2.shape
    assert jnp.allclose(out2, ref2, atol=2e-2, rtol=2e-2)

    # Case 4: force multiple K grid steps (in=256, tk=128) to exercise the
    # resident-accumulator path; f32 compute for a tight check.
    in3, out3 = 256, 64
    x3 = jax.random.normal(k_x3, (batch, seq, in3), jnp.float32)
    w3, b3 = init_linear_params(k_p3, in3, out3)
    out4 = residual_dense(x3, w3, b3, activation=jnp.tanh, tk=128,
                          compute_dtype=jnp.float32)
    out4 = jax.block_until_ready(out4)
    ref4 = jnp.tanh(x3 @ w3 + b3)
    assert out4.shape == ref4.shape
    assert jnp.allclose(out4, ref4, atol=1e-5, rtol=1e-5)

    print("KERNEL_OK")
</pallas_src>

<mosaic_0001>
module attributes {stable_mosaic.version = 11 : i64} {
  func.func @_residual_dense_kernel(%arg0: i32, %arg1: i32, %arg2: i32, %arg3: memref<8x128xf32, #tpu.memory_space<vmem>>, %arg4: memref<128x128xf32, #tpu.memory_space<vmem>>, %arg5: memref<1x128xf32, #tpu.memory_space<vmem>>, %arg6: memref<8x128xf32, #tpu.memory_space<vmem>>, %arg7: memref<8x128xf32, #tpu.memory_space<vmem>>) attributes {dimension_semantics = [#tpu.dimension_semantics<parallel>, #tpu.dimension_semantics<parallel>, #tpu.dimension_semantics<arbitrary>], iteration_bounds = array<i64: 2, 1, 1>, scalar_prefetch = 0 : i64, scratch_operands = 0 : i64, tpu.core_type = #tpu.core_type<tc>, window_params = [{transform_indices = @transform_0, window_bounds = array<i64: 8, 128>}, {transform_indices = @transform_1, window_bounds = array<i64: 128, 128>}, {transform_indices = @transform_2, window_bounds = array<i64: 1, 128>}, {transform_indices = @transform_3, window_bounds = array<i64: 8, 128>}, {transform_indices = @transform_4, window_bounds = array<i64: 8, 128>}]} {
    %c0_i32 = arith.constant 0 : i32
    %0 = arith.cmpi eq, %arg2, %c0_i32 : i32
    %1 = arith.extui %0 : i1 to i32
    %c0_i32_0 = arith.constant 0 : i32
    %2 = arith.cmpi ne, %1, %c0_i32_0 : i32
    scf.if %2 {
      %cst_10 = arith.constant 0.000000e+00 : f32
      %12 = vector.broadcast %cst_10 : f32 to vector<8x128xf32>
      %c0_11 = arith.constant 0 : index
      %c0_12 = arith.constant 0 : index
      %13 = vector.load %arg7[%c0_11, %c0_12] : memref<8x128xf32, #tpu.memory_space<vmem>>, vector<8x128xf32>
      tpu.vector_store %arg7[%c0_11, %c0_12], %12 {strides = array<i32>} : memref<8x128xf32, #tpu.memory_space<vmem>>, vector<8x128xf32>,
    } else {
    }
    %c0 = arith.constant 0 : index
    %c0_1 = arith.constant 0 : index
    %3 = vector.load %arg7[%c0, %c0_1] : memref<8x128xf32, #tpu.memory_space<vmem>>, vector<8x128xf32>
    %c0_2 = arith.constant 0 : index
    %c0_3 = arith.constant 0 : index
    %4 = vector.load %arg3[%c0_2, %c0_3] : memref<8x128xf32, #tpu.memory_space<vmem>>, vector<8x128xf32>
    %c0_4 = arith.constant 0 : index
    %c0_5 = arith.constant 0 : index
    %5 = vector.load %arg4[%c0_4, %c0_5] : memref<128x128xf32, #tpu.memory_space<vmem>>, vector<128x128xf32>
    %cst = arith.constant dense<0.000000e+00> : vector<8x128xf32>
    %6 = tpu.matmul %4, %5, %cst {dimension_numbers = #tpu.dot_dimension_numbers<[1], [0], [0], [1], [0, 0, 1, 1], [], []>} : vector<8x128xf32>, vector<128x128xf32>, vector<8x128xf32> -> vector<8x128xf32>
    %7 = arith.addf %3, %6 : vector<8x128xf32>
    %c0_6 = arith.constant 0 : index
    %c0_7 = arith.constant 0 : index
    %8 = vector.load %arg7[%c0_6, %c0_7] : memref<8x128xf32, #tpu.memory_space<vmem>>, vector<8x128xf32>
    tpu.vector_store %arg7[%c0_6, %c0_7], %7 {strides = array<i32>} : memref<8x128xf32, #tpu.memory_space<vmem>>, vector<8x128xf32>,
    %c0_i32_8 = arith.constant 0 : i32
    %9 = arith.cmpi eq, %arg2, %c0_i32_8 : i32
    %10 = arith.extui %9 : i1 to i32
    %c0_i32_9 = arith.constant 0 : i32
    %11 = arith.cmpi ne, %10, %c0_i32_9 : i32
    scf.if %11 {
      %c0_10 = arith.constant 0 : index
      %c0_11 = arith.constant 0 : index
      %12 = vector.load %arg7[%c0_10, %c0_11] : memref<8x128xf32, #tpu.memory_space<vmem>>, vector<8x128xf32>
      %c0_12 = arith.constant 0 : index
      %c0_13 = arith.constant 0 : index
      %13 = vector.load %arg5[%c0_12, %c0_13] : memref<1x128xf32, #tpu.memory_space<vmem>>, vector<1x128xf32>
      %14 = vector.broadcast %13 : vector<1x128xf32> to vector<8x128xf32>
      %15 = arith.addf %12, %14 : vector<8x128xf32>
      %c0_14 = arith.constant 0 : index
      %c0_15 = arith.constant 0 : index
      %16 = vector.load %arg6[%c0_14, %c0_15] : memref<8x128xf32, #tpu.memory_space<vmem>>, vector<8x128xf32>
      %17 = arith.addf %15, %16 : vector<8x128xf32>
      %c0_16 = arith.constant 0 : index
      %c0_17 = arith.constant 0 : index
      %18 = vector.load %arg7[%c0_16, %c0_17] : memref<8x128xf32, #tpu.memory_space<vmem>>, vector<8x128xf32>
      tpu.vector_store %arg7[%c0_16, %c0_17], %17 {strides = array<i32>} : memref<8x128xf32, #tpu.memory_space<vmem>>, vector<8x128xf32>,
    } else {
    }
    return
  }
  func.func @transform_0(%arg0: i32, %arg1: i32, %arg2: i32) -> (i32, i32) {
    %c0_i32 = arith.constant 0 : i32
    return %arg0, %arg2 : i32, i32
  }
  func.func @transform_1(%arg0: i32, %arg1: i32, %arg2: i32) -> (i32, i32) {
    %c0_i32 = arith.constant 0 : i32
    return %arg2, %arg1 : i32, i32
  }
  func.func @transform_2(%arg0: i32, %arg1: i32, %arg2: i32) -> (i32, i32) {
    %c0_i32 = arith.constant 0 : i32
    %c0_i32_0 = arith.constant 0 : i32
    return %c0_i32, %arg1 : i32, i32
  }
  func.func @transform_3(%arg0: i32, %arg1: i32, %arg2: i32) -> (i32, i32) {
    %c0_i32 = arith.constant 0 : i32
    return %arg0, %arg1 : i32, i32
  }
  func.func @transform_4(%arg0: i32, %arg1: i32, %arg2: i32) -> (i32, i32) {
    %c0_i32 = arith.constant 0 : i32
    return %arg0, %arg1 : i32, i32
  }
}

</mosaic_0001>

<llo_original>
// kernel: tpu_custom_call.1
$region0: #{tpu_custom_call.1}
  #allocation0 [shape = 'u32[]', space=smem, size = 0x4, offset = 0x4, fixed_abs, tag = 'smem constant byte address 0x4 - core index']
  #allocation1 [shape = 'u32[144,128]{1,0:T(1,128)}', space=vmem, size = 0x12000, scoped, tag = 'internal scratch']
  %s0 = inlined_call_operand.hbm [shape: f32[16,128], index: 0, kind: input, shape index: {}]
  %s1 = inlined_call_operand.hbm [shape: f32[128,128], index: 1, kind: input, shape index: {}]
  %s2 = inlined_call_operand.vmem [shape: f32[1,128], index: 2, kind: input, shape index: {}]
  %s3 = inlined_call_operand.hbm [shape: f32[16,128], index: 3, kind: input, shape index: {}]
  %s4 = inlined_call_operand.hbm [shape: f32[16,128], index: 4, kind: output, shape index: {}]
  %s5 = sld [smem:[#allocation0]]
  $region69: #{tpu_custom_call.1} parent=0
    _
  %s7 = ssub.s32 1, %s5
  %s8 = scalar_select 0, %s7, %s5
  $region1: #{tpu_custom_call.1} parent=0
    #allocation2 [shape = 'u8[8192]{0}', space=vmem, size = 0x2000, scoped, tag = 'input window, operand 0']
    #allocation3 [shape = 's32[2]{0}', space=sflag, size = 0x8, scoped, tag = 'scoped memory for tpu_custom_call.1']
    #allocation4 [shape = 's32[2]{0}', space=sflag, size = 0x8, scoped, tag = 'scoped memory for tpu_custom_call.1']
    #allocation5 [shape = 'u8[65536]{0}', space=vmem, size = 0x10000, scoped, tag = 'input window, operand 1, single buffered']
    #allocation6 [shape = 's32[1]{0}', space=sflag, size = 0x4, scoped, tag = 'scoped memory for tpu_custom_call.1']
    #allocation7 [shape = 'u8[8192]{0}', space=vmem, size = 0x2000, scoped, tag = 'input window, operand 3']
    #allocation8 [shape = 'u8[8192]{0}', space=vmem, size = 0x2000, scoped, tag = 'output window, operand 0']
    %9 = vsyncpa [#allocation3], 0
    %s10 = scalar_lea.sflag [#allocation3], 1
    %11 = vsyncpa %s10, 0
    %12 = vsyncpa [#allocation6], 0
    %13 = vsyncpa [#allocation4], 0
    %s14 = scalar_lea.sflag [#allocation4], 1
    %15 = vsyncpa %s14, 0
    loop: start=0, step=1, limit=4
    $region2: #{tpu_custom_call.1} parent=1 // loop_pre_header
      _
    $region3: #{tpu_custom_call.1} parent=1 // loop_header
      %s17 = sphi 0, %s21
      %p18 = scmp.ge.s32.totalorder %s17, 4
      %s24 = sphi 0, %s43
      %s25 = sphi 0, %s39
      %s26 = sphi 0, %s35
      %s27 = sphi 0, %s24
      %s28 = sphi 0, %s25
      %s29 = sphi 0, %s26
      %s30 = sphi 0, %s27
      %s31 = sphi 0, %s28
      %s32 = sphi 0, %s29
      %s48 = sphi 0, %s50
      %s51 = sphi 0, %s48
      %s52 = sphi 0, %s51
      %s68 = sphi 0, %s52
      %s76 = sphi 0, %s78
      %s79 = sphi 0, %s76
      %s80 = sphi 0, %s79
      %s96 = sphi 0, %s80
      %s102 = sphi 0, %s104
      %s105 = sphi 0, %s102
      %s106 = sphi 0, %s105
      %s122 = sphi 0, %s106
      %s130 = sphi 0, %s132
      %s133 = sphi 0, %s130
      %s134 = sphi 0, %s133
      %s150 = sphi 0, %s134
      %s158 = sphi 0, %s160
      %s161 = sphi 0, %s158
      %s162 = sphi 0, %s161
      %s178 = sphi 0, %s162
    $region4: #{tpu_custom_call.1} parent=1 // loop_header_branch
      %20 = sbr.rel (%p18) target = $region8
    $region5: #{tpu_custom_call.1} parent=1 // loop_body
      %s22 = ssub.s32 %s17, 1
      %s23 = ssub.s32 %s17, 2
      %s33 = sadd.s32 1, %s26
      %p34 = scmp.ge.s32.totalorder %s33, 1
      %s35 = scalar_select %p34, 0, %s33
      %s36 = sadd.s32 1, %s25
      %s37 = scalar_select %p34, %s36, %s25
      %p38 = scmp.ge.s32.totalorder %s37, 1
      %s39 = scalar_select %p38, 0, %s37
      %s40 = sadd.s32 1, %s24
      %s41 = scalar_select %p38, %s40, %s24
      %p42 = scmp.ge.s32.totalorder %s41, 2
      %s43 = scalar_select %p42, 0, %s41
      %s44 = ssub.s32 %s24, %s43
      %s45 = ssub.s32 %s26, %s35
      %s46 = sor.u32 %s44, %s45
      %p47 = scmp.eq.s32.totalorder %s46, 0
      %s49 = sadd.s32 %s48, 1
      %s50 = scalar_select %p47, %s48, %s49
      %p53 = pneg %p47
      %p54 = scmp.eq.s32.totalorder %s17, 1
      %p55 = por %p53, %p54
      %p56 = scmp.ne.s32.totalorder %s48, %s51
      %p57 = scmp.eq.s32.totalorder %s17, 0
      %p58 = por %p56, %p57
      %p59 = scmp.ne.s32.totalorder %s48, %s51
      %p60 = scmp.eq.s32.totalorder %s22, 1
      %p61 = por %p59, %p60
      %p62 = scmp.ne.s32.totalorder %s51, %s52
      %p63 = scmp.eq.s32.totalorder %s22, 0
      %p64 = por %p62, %p63
      %p65 = scmp.ne.s32.totalorder %s51, %s52
      %p66 = scmp.eq.s32.totalorder %s23, 1
      %p67 = por %p65, %p66
      %p69 = scmp.ne.s32.totalorder %s52, %s68
      %p70 = scmp.eq.s32.totalorder %s23, 0
      %p71 = por %p69, %p70
      %s72 = ssub.s32 %s26, %s35
      %s73 = ssub.s32 %s25, %s39
      %s74 = sor.u32 %s72, %s73
      %p75 = scmp.eq.s32.totalorder %s74, 0
      %s77 = sadd.s32 %s76, 1
      %s78 = scalar_select %p75, %s76, %s77
      %p81 = pneg %p75
      %p82 = scmp.eq.s32.totalorder %s17, 1
      %p83 = por %p81, %p82
      %p84 = scmp.ne.s32.totalorder %s76, %s79
      %p85 = scmp.eq.s32.totalorder %s17, 0
      %p86 = por %p84, %p85
      %p87 = scmp.ne.s32.totalorder %s76, %s79
      %p88 = scmp.eq.s32.totalorder %s22, 1
      %p89 = por %p87, %p88
      %p90 = scmp.ne.s32.totalorder %s79, %s80
      %p91 = scmp.eq.s32.totalorder %s22, 0
      %p92 = por %p90, %p91
      %p93 = scmp.ne.s32.totalorder %s79, %s80
      %p94 = scmp.eq.s32.totalorder %s23, 1
      %p95 = por %p93, %p94
      %p97 = scmp.ne.s32.totalorder %s80, %s96
      %p98 = scmp.eq.s32.totalorder %s23, 0
      %p99 = por %p97, %p98
      %s100 = ssub.s32 %s25, %s39
      %p101 = scmp.eq.s32.totalorder %s100, 0
      %s103 = sadd.s32 %s102, 1
      %s104 = scalar_select %p101, %s102, %s103
      %p107 = pneg %p101
      %p108 = scmp.eq.s32.totalorder %s17, 1
      %p109 = por %p107, %p108
      %p110 = scmp.ne.s32.totalorder %s102, %s105
      %p111 = scmp.eq.s32.totalorder %s17, 0
      %p112 = por %p110, %p111
      %p113 = scmp.ne.s32.totalorder %s102, %s105
      %p114 = scmp.eq.s32.totalorder %s22, 1
      %p115 = por %p113, %p114
      %p116 = scmp.ne.s32.totalorder %s105, %s106
      %p117 = scmp.eq.s32.totalorder %s22, 0
      %p118 = por %p116, %p117
      %p119 = scmp.ne.s32.totalorder %s105, %s106
      %p120 = scmp.eq.s32.totalorder %s23, 1
      %p121 = por %p119, %p120
      %p123 = scmp.ne.s32.totalorder %s106, %s122
      %p124 = scmp.eq.s32.totalorder %s23, 0
      %p125 = por %p123, %p124
      %s126 = ssub.s32 %s24, %s43
      %s127 = ssub.s32 %s25, %s39
      %s128 = sor.u32 %s126, %s127
      %p129 = scmp.eq.s32.totalorder %s128, 0
      %s131 = sadd.s32 %s130, 1
      %s132 = scalar_select %p129, %s130, %s131
      %p135 = pneg %p129
      %p136 = scmp.eq.s32.totalorder %s17, 1
      %p137 = por %p135, %p136
      %p138 = scmp.ne.s32.totalorder %s130, %s133
      %p139 = scmp.eq.s32.totalorder %s17, 0
      %p140 = por %p138, %p139
      %p141 = scmp.ne.s32.totalorder %s130, %s133
      %p142 = scmp.eq.s32.totalorder %s22, 1
      %p143 = por %p141, %p142
      %p144 = scmp.ne.s32.totalorder %s133, %s134
      %p145 = scmp.eq.s32.totalorder %s22, 0
      %p146 = por %p144, %p145
      %p147 = scmp.ne.s32.totalorder %s133, %s134
      %p148 = scmp.eq.s32.totalorder %s23, 1
      %p149 = por %p147, %p148
      %p151 = scmp.ne.s32.totalorder %s134, %s150
      %p152 = scmp.eq.s32.totalorder %s23, 0
      %p153 = por %p151, %p152
      %s154 = ssub.s32 %s24, %s43
      %s155 = ssub.s32 %s25, %s39
      %s156 = sor.u32 %s154, %s155
      %p157 = scmp.eq.s32.totalorder %s156, 0
      %s159 = sadd.s32 %s158, 1
      %s160 = scalar_select %p157, %s158, %s159
      %p163 = pneg %p157
      %p164 = scmp.eq.s32.totalorder %s17, 1
      %p165 = por %p163, %p164
      %p166 = scmp.ne.s32.totalorder %s158, %s161
      %p167 = scmp.eq.s32.totalorder %s17, 0
      %p168 = por %p166, %p167
      %p169 = scmp.ne.s32.totalorder %s158, %s161
      %p170 = scmp.eq.s32.totalorder %s22, 1
      %p171 = por %p169, %p170
      %p172 = scmp.ne.s32.totalorder %s161, %s162
      %p173 = scmp.eq.s32.totalorder %s22, 0
      %p174 = por %p172, %p173
      %p175 = scmp.ne.s32.totalorder %s161, %s162
      %p176 = scmp.eq.s32.totalorder %s23, 1
      %p177 = por %p175, %p176
      %p179 = scmp.ne.s32.totalorder %s162, %s178
      %p180 = scmp.eq.s32.totalorder %s23, 0
      %p181 = por %p179, %p180
      %p182 = scmp.le.s32.totalorder 1, %s17
      %p183 = scmp.lt.s32.totalorder %s17, 3
      %p184 = pnand %p182, %p183
      %p185 = pneg %p184
      // Predicated region
      $region9: #{tpu_custom_call.1} parent=5 // pred_check
        _
      $region10: #{tpu_custom_call.1} parent=5 // pred_check_branch
        %187 = sbr.rel (%p184) target = $region12
      $region11: #{tpu_custom_call.1} parent=5 // pred_region
        %s188 = ssub.s32 %s17, 1
        // Predicated region
        $region13: #{tpu_custom_call.1} parent=11 // pred_check
          %p189 = pneg %p92
        $region14: #{tpu_custom_call.1} parent=11 // pred_check_branch
          %191 = sbr.rel (%p189) target = $region16
        $region15: #{tpu_custom_call.1} parent=11 // pred_region
          %s192 = smul.u32 16, %s29
          %s194 = ssub.s32 2048, 2048
          %195 = vsyncadd [#allocation6], %s194
          %s196 = sadd.s32 %s28, %s192
          %s197 = smul.addr %s196, 128
          %s198 = scalar_lea.hbm %s1, %s197
          %s199 = sshll.u32 [#allocation5], 4
          %s200 = int_to_ptr.vmem [resolvable:$true] %s199
          %205 = dma.hbm_to_vmem [thread:$0]  %s198, 2048, %s200, [#allocation6], 128, 128, 8
        $region16: #{tpu_custom_call.1} parent=11 // pred_fallthru
          _
        // Predicated region
        $region17: #{tpu_custom_call.1} parent=11 // pred_check
          %p206 = pneg %p118
        $region18: #{tpu_custom_call.1} parent=11 // pred_check_branch
          %208 = sbr.rel (%p206) target = $region20
        $region19: #{tpu_custom_call.1} parent=11 // pred_region
          %p209 = scmp.lt.s32.totalorder %s28, 0
          %s210 = scalar_select %p209, %s28, 0
          %s211 = scalar_lea.vmem %s2, %s210
        $region20: #{tpu_custom_call.1} parent=11 // pred_fallthru
          _
      $region12: #{tpu_custom_call.1} parent=5 // pred_fallthru
        _
      %p212 = scmp.lt.s32.totalorder %s17, 2
      // Predicated region
      $region21: #{tpu_custom_call.1} parent=5 // pred_check
        %p213 = pneg %p212
      $region22: #{tpu_custom_call.1} parent=5 // pred_check_branch
        %215 = sbr.rel (%p213) target = $region24
      $region23: #{tpu_custom_call.1} parent=5 // pred_region
        // Predicated region
        $region25: #{tpu_custom_call.1} parent=23 // pred_check
          %p216 = pneg %p58
        $region26: #{tpu_custom_call.1} parent=23 // pred_check_branch
          %218 = sbr.rel (%p216) target = $region28
        $region27: #{tpu_custom_call.1} parent=23 // pred_region
          %s219 = sand.u32 %s17, 1
          %s220 = scalar_lea.sflag [#allocation3], %s219
          %s221 = sand.u32 %s48, 1
          %s222 = smul.addr %s221, 8
          %s223 = scalar_lea.vmem [#allocation2], %s222
          %s225 = ssub.s32 128, 128
          %226 = vsyncadd %s220, %s225
          %s227 = sadd.s32 %s26, %s24
          %s228 = smul.addr %s227, 128
          %s229 = scalar_lea.hbm %s0, %s228
          %s231 = sshll.u32 %s223, 4
          %s232 = int_to_ptr.vmem [resolvable:$true] %s231
          %234 = dma.hbm_to_vmem [thread:$0]  %s229, 128, %s232, %s220
        $region28: #{tpu_custom_call.1} parent=23 // pred_fallthru
          _
        // Predicated region
        $region29: #{tpu_custom_call.1} parent=23 // pred_check
          %p235 = pneg %p140
        $region30: #{tpu_custom_call.1} parent=23 // pred_check_branch
          %237 = sbr.rel (%p235) target = $region32
        $region31: #{tpu_custom_call.1} parent=23 // pred_region
          %s238 = sand.u32 %s17, 1
          %s239 = scalar_lea.sflag [#allocation3], %s238
          %s240 = sand.u32 %s130, 1
          %s241 = smul.addr %s240, 8
          %s242 = scalar_lea.vmem [#allocation7], %s241
          %s244 = ssub.s32 128, 128
          %245 = vsyncadd %s239, %s244
          %s246 = sadd.s32 %s25, %s24
          %s247 = smul.addr %s246, 128
          %s248 = scalar_lea.hbm %s3, %s247
          %s250 = sshll.u32 %s242, 4
          %s251 = int_to_ptr.vmem [resolvable:$true] %s250
          %253 = dma.hbm_to_vmem [thread:$0]  %s248, 128, %s251, %s239
        $region32: #{tpu_custom_call.1} parent=23 // pred_fallthru
          _
      $region24: #{tpu_custom_call.1} parent=5 // pred_fallthru
        _
      %p254 = scmp.le.s32.totalorder 1, %s17
      %p255 = scmp.lt.s32.totalorder %s17, 3
      %p256 = pnand %p254, %p255
      %p257 = pneg %p256
      // Predicated region
      $region33: #{tpu_custom_call.1} parent=5 // pred_check
        _
      $region34: #{tpu_custom_call.1} parent=5 // pred_check_branch
        %259 = sbr.rel (%p256) target = $region36
      $region35: #{tpu_custom_call.1} parent=5 // pred_region
        %s260 = ssub.s32 %s17, 1
        %s261 = sand.u32 %s22, 1
        %s262 = scalar_lea.sflag [#allocation3], %s261
        %s263 = sand.u32 %s51, 1
        %s264 = smul.addr %s263, 8
        %s265 = scalar_lea.vmem [#allocation2], %s264
        // Predicated region
        $region37: #{tpu_custom_call.1} parent=35 // pred_check
          %p266 = pneg %p64
        $region38: #{tpu_custom_call.1} parent=35 // pred_check_branch
          %268 = sbr.rel (%p266) target = $region40
        $region39: #{tpu_custom_call.1} parent=35 // pred_region
          %269 = dma.done %s262, 128
        $region40: #{tpu_custom_call.1} parent=35 // pred_fallthru
          _
        // Predicated region
        $region41: #{tpu_custom_call.1} parent=35 // pred_check
          %p270 = pneg %p92
        $region42: #{tpu_custom_call.1} parent=35 // pred_check_branch
          %272 = sbr.rel (%p270) target = $region44
        $region43: #{tpu_custom_call.1} parent=35 // pred_region
          %273 = dma.done [#allocation6], 2048
        $region44: #{tpu_custom_call.1} parent=35 // pred_fallthru
          _
        %s274 = sand.u32 %s22, 1
        %s275 = scalar_lea.sflag [#allocation3], %s274
        %s276 = sand.u32 %s133, 1
        %s277 = smul.addr %s276, 8
        %s278 = scalar_lea.vmem [#allocation7], %s277
        // Predicated region
        $region45: #{tpu_custom_call.1} parent=35 // pred_check
          %p279 = pneg %p146
        $region46: #{tpu_custom_call.1} parent=35 // pred_check_branch
          %281 = sbr.rel (%p279) target = $region48
        $region47: #{tpu_custom_call.1} parent=35 // pred_region
          %282 = dma.done %s275, 128
        $region48: #{tpu_custom_call.1} parent=35 // pred_fallthru
          _
        %s283 = sand.u32 %s22, 1
        %s284 = scalar_lea.sflag [#allocation3], %s283
        %s285 = sand.u32 %s51, 1
        %s286 = smul.addr %s285, 8
        %s287 = scalar_lea.vmem [#allocation2], %s286
        %p288 = pneg %p64
        %p289 = pneg %p61
        %p290 = pneg %p92
        %p291 = pneg %p89
        %p292 = scmp.lt.s32.totalorder %s28, 0
        %s293 = scalar_select %p292, %s28, 0
        %s294 = scalar_lea.vmem %s2, %s293
        %p295 = pneg %p118
        %p296 = pneg %p115
        %s297 = sand.u32 %s22, 1
        %s298 = scalar_lea.sflag [#allocation3], %s297
        %s299 = sand.u32 %s133, 1
        %s300 = smul.addr %s299, 8
        %s301 = scalar_lea.vmem [#allocation7], %s300
        %p302 = pneg %p146
        %p303 = pneg %p143
        %p304 = pneg %p174
        %p305 = pneg %p171
        %s306 = sand.u32 %s161, 1
        %s307 = scalar_lea.sflag [#allocation4], %s306
        %s308 = sand.u32 %s161, 1
        %s309 = smul.addr %s308, 8
        %s310 = scalar_lea.vmem [#allocation8], %s309
        %s311 = smul.u32 16, %s29
        %p312 = scmp.lt.s32.totalorder %s28, 0
        %s313 = scalar_select %p312, %s28, 0
        %s314 = scalar_lea.vmem %s2, %s313
        %p315 = scmp.eq.s32.totalorder %s29, 0
        // Predicated region
        $region49: #{tpu_custom_call.1} parent=35 // pred_check
          %p316 = pneg %p315
        $region50: #{tpu_custom_call.1} parent=35 // pred_check_branch
          %318 = sbr.rel (%p316) target = $region52
        $region51: #{tpu_custom_call.1} parent=35 // pred_region
          %319 = vst [vmem:[%s310] sm:$0xff] 0.0
        $region52: #{tpu_custom_call.1} parent=35 // pred_fallthru
          _
        %v320 = vld [vmem:[%s310] sm:$0xff]
        %v321 = vld [vmem:[%s265] sm:$0xff]
        %v322 = vld [vmem:[#allocation5] sm:$0xff]
        %v323 = vld [vmem:[#allocation5 + $0x8] sm:$0xff]
        %v324 = vld [vmem:[#allocation5 + $0x10] sm:$0xff]
        %v325 = vld [vmem:[#allocation5 + $0x18] sm:$0xff]
        %v326 = vld [vmem:[#allocation5 + $0x20] sm:$0xff]
        %v327 = vld [vmem:[#allocation5 + $0x28] sm:$0xff]
        %v328 = vld [vmem:[#allocation5 + $0x30] sm:$0xff]
        %v329 = vld [vmem:[#allocation5 + $0x38] sm:$0xff]
        %v330 = vld [vmem:[#allocation5 + $0x40] sm:$0xff]
        %v331 = vld [vmem:[#allocation5 + $0x48] sm:$0xff]
        %v332 = vld [vmem:[#allocation5 + $0x50] sm:$0xff]
        %v333 = vld [vmem:[#allocation5 + $0x58] sm:$0xff]
        %v334 = vld [vmem:[#allocation5 + $0x60] sm:$0xff]
        %v335 = vld [vmem:[#allocation5 + $0x68] sm:$0xff]
        %v336 = vld [vmem:[#allocation5 + $0x70] sm:$0xff]
        %v337 = vld [vmem:[#allocation5 + $0x78] sm:$0xff]
        %338 = vmatprep.subr.mxu0 0.0
        %339 = vmatpush1.msra.mxu0 %v322
        %340 = vmatprep.subr.mxu0 0.0
        %341 = vmatpush1.msra.mxu0 %v323
        %342 = vmatprep.subr.mxu0 0.0
        %343 = vmatpush1.msra.mxu0 %v324
        %344 = vmatprep.subr.mxu0 0.0
        %345 = vmatpush1.msra.mxu0 %v325
        %346 = vmatprep.subr.mxu0 0.0
        %347 = vmatpush1.msra.mxu0 %v326
        %348 = vmatprep.subr.mxu0 0.0
        %349 = vmatpush1.msra.mxu0 %v327
        %350 = vmatprep.subr.mxu0 0.0
        %351 = vmatpush1.msra.mxu0 %v328
        %352 = vmatprep.subr.mxu0 0.0
        %353 = vmatpush1.msra.mxu0 %v329
        %354 = vmatprep.subr.mxu0 0.0
        %355 = vmatpush1.msra.mxu0 %v330
        %356 = vmatprep.subr.mxu0 0.0
        %357 = vmatpush1.msra.mxu0 %v331
        %358 = vmatprep.subr.mxu0 0.0
        %359 = vmatpush1.msra.mxu0 %v332
        %360 = vmatprep.subr.mxu0 0.0
        %361 = vmatpush1.msra.mxu0 %v333
        %362 = vmatprep.subr.mxu0 0.0
        %363 = vmatpush1.msra.mxu0 %v334
        %364 = vmatprep.subr.mxu0 0.0
        %365 = vmatpush1.msra.mxu0 %v335
        %366 = vmatprep.subr.mxu0 0.0
        %367 = vmatpush1.msra.mxu0 %v336
        %368 = vmatprep.subr.mxu0 0.0
        %369 = vmatpush1.msra.mxu0 %v337
        %370 = vmatprep.subr.mxu0 0.0
        %371 = vmatpush1.msra.mxu0 0.0
        %372 = vmatprep.subr.mxu0 0.0
        %373 = vmatpush1.msra.mxu0 0.0
        %374 = vmatprep.subr.mxu0 0.0
        %375 = vmatpush1.msra.mxu0 0.0
        %376 = vmatprep.subr.mxu0 0.0
        %377 = vmatpush1.msra.mxu0 0.0
        %378 = vmatprep.subr.mxu0 0.0
        %379 = vmatpush1.msra.mxu0 0.0
        %380 = vmatprep.subr.mxu0 0.0
        %381 = vmatpush1.msra.mxu0 0.0
        %382 = vmatprep.subr.mxu0 0.0
        %383 = vmatpush1.msra.mxu0 0.0
        %384 = vmatprep.subr.mxu0 0.0
        %385 = vmatpush1.msra.mxu0 0.0
        %386 = vmatprep.subr.mxu0 0.0
        %387 = vmatpush1.msra.mxu0 0.0
        %388 = vmatprep.subr.mxu0 0.0
        %389 = vmatpush1.msra.mxu0 0.0
        %390 = vmatprep.subr.mxu0 0.0
        %391 = vmatpush1.msra.mxu0 0.0
        %392 = vmatprep.subr.mxu0 0.0
        %393 = vmatpush1.msra.mxu0 0.0
        %394 = vmatprep.subr.mxu0 0.0
        %395 = vmatpush1.msra.mxu0 0.0
        %396 = vmatprep.subr.mxu0 0.0
        %397 = vmatpush1.msra.mxu0 0.0
        %398 = vmatprep.subr.mxu0 0.0
        %399 = vmatpush1.msra.mxu0 0.0
        %400 = vmatprep.subr.mxu0 0.0
        %401 = vmatpush1.msra.mxu0 0.0
        %402 = vmatprep.mubr.f32.mxu0 0.0
        %403 = vmatmul.mubr.f32.gmra.mrb[0].mxu0 %v321
        %v404 = vpop.f32.mrb[0].mxu0
        %v405 = vadd.f32 0.0, %v404
        %v406 = vpop.f32.mrb[0].mxu0
        %407 = vdwg.mxu0
        %v408 = vadd.f32 %v320, %v405
        %409 = vst [vmem:[%s310] sm:$0xff] %v408
        // Predicated region
        $region53: #{tpu_custom_call.1} parent=35 // pred_check
          %p410 = pneg %p315
        $region54: #{tpu_custom_call.1} parent=35 // pred_check_branch
          %412 = sbr.rel (%p410) target = $region56
        $region55: #{tpu_custom_call.1} parent=35 // pred_region
          %v413 = vld [vmem:[%s310] sm:$0xff]
          %v414 = vld [vmem:[%s314] sm:$0x1]
          %v416 = vlaneseq
          %v417 = vshrl.u32 %v416, 7
          %v418 = vsub.s32 0, %v417
          %v419 = vrot.slane %v414, %v418
          %v421 = vadd.f32 %v413, %v419
          %v422 = vld [vmem:[%s278] sm:$0xff]
          %v423 = vadd.f32 %v421, %v422
          %424 = vst [vmem:[%s310] sm:$0xff] %v423
        $region56: #{tpu_custom_call.1} parent=35 // pred_fallthru
          _
        %s425 = sand.u32 %s161, 1
        %s426 = scalar_lea.sflag [#allocation4], %s425
        %s427 = sand.u32 %s161, 1
        %s428 = smul.addr %s427, 8
        %s429 = scalar_lea.vmem [#allocation8], %s428
        // Predicated region
        $region57: #{tpu_custom_call.1} parent=35 // pred_check
          %p430 = pneg %p171
        $region58: #{tpu_custom_call.1} parent=35 // pred_check_branch
          %432 = sbr.rel (%p430) target = $region60
        $region59: #{tpu_custom_call.1} parent=35 // pred_region
          %s434 = ssub.s32 128, 128
          %435 = vsyncadd %s426, %s434
          %s436 = sadd.s32 %s28, %s27
          %s437 = smul.addr %s436, 128
          %s438 = scalar_lea.hbm %s4, %s437
          %s440 = sshll.u32 %s429, 4
          %s441 = int_to_ptr.vmem [resolvable:$true] %s440
          %443 = dma.vmem_to_hbm [thread:$0]  %s441, 128, %s438, %s426
        $region60: #{tpu_custom_call.1} parent=35 // pred_fallthru
          _
      $region36: #{tpu_custom_call.1} parent=5 // pred_fallthru
        _
      %p444 = scmp.le.s32.totalorder 2, %s17
      // Predicated region
      $region61: #{tpu_custom_call.1} parent=5 // pred_check
        %p445 = pneg %p444
      $region62: #{tpu_custom_call.1} parent=5 // pred_check_branch
        %447 = sbr.rel (%p445) target = $region64
      $region63: #{tpu_custom_call.1} parent=5 // pred_region
        %s448 = ssub.s32 %s17, 2
        // Predicated region
        $region65: #{tpu_custom_call.1} parent=63 // pred_check
          %p449 = pneg %p177
        $region66: #{tpu_custom_call.1} parent=63 // pred_check_branch
          %451 = sbr.rel (%p449) target = $region68
        $region67: #{tpu_custom_call.1} parent=63 // pred_region
          %s452 = sand.u32 %s162, 1
          %s453 = scalar_lea.sflag [#allocation4], %s452
          %s454 = sand.u32 %s162, 1
          %s455 = smul.addr %s454, 8
          %s456 = scalar_lea.vmem [#allocation8], %s455
          %457 = dma.done %s453, 128
        $region68: #{tpu_custom_call.1} parent=63 // pred_fallthru
          _
      $region64: #{tpu_custom_call.1} parent=5 // pred_fallthru
        _
    $region6: #{tpu_custom_call.1} parent=1 // loop_footer
      %s21 = sadd.s32 1, %s17
    $region7: #{tpu_custom_call.1} parent=1 // loop_footer_branch
      %16 = sbr.rel target = $region3
    $region8: #{tpu_custom_call.1} parent=1 // loop_exit
      _
    %458 = vsyncpa [#allocation3], 1
    %s459 = scalar_lea.sflag [#allocation3], 1
    %460 = vsyncpa %s459, 1
    %461 = vsyncpa [#allocation6], 1
    %462 = vsyncpa [#allocation4], 1
    %s463 = scalar_lea.sflag [#allocation4], 1
    %464 = vsyncpa %s463, 1

</llo_original>
